<compile_context>
chip_gen: v7x
topology: tpu7x:2x2x1
jax: 0.10.0
libtpu: 0.0.40
codegen_flags: <defaults>
</compile_context>

<pallas_src>
import numpy as np
import jax
import jax.numpy as jnp
from jax.experimental import pallas as pl
from jax.experimental.pallas import tpu as pltpu


def _make_blur1d_kernel(L, L_out, K, pad0, pad1, taps):
    """FIR body for static (L, L_out, K, pad0, pad1).

    `taps` are the flipped, normalized, scaled coefficients as Python floats,
    so out[:, n] = sum_k taps[k] * xpad[:, n + k] with xpad = zero-pad(x).
    """
    # Interior output columns: every tap reads a real x element.
    W = L - K + 1                              # interior width (<= 0 if L < K)
    has_interior = W > 0
    int_lo = pad0 if has_interior else 0       # when W > 0: pad0 + W <= L_out
    int_hi = pad0 + W if has_interior else 0

    def _boundary_col(x_ref, n, tr):
        """One boundary output column n (static index) -> (tr, 1) float32."""
        i_lo = max(0, pad0 - n)                          # taps inside the data
        i_hi = min(K - 1, L - 1 - n + pad0)
        if i_lo > i_hi:                                  # column is pure halo
            return jnp.zeros((tr, 1), jnp.float32)
        j = n + i_lo - pad0
        col = x_ref[:, j:j + 1].astype(jnp.float32) * taps[i_lo]
        for i in range(i_lo + 1, i_hi + 1):
            j = n + i - pad0
            col = col + x_ref[:, j:j + 1].astype(jnp.float32) * taps[i]
        return col

    def kernel(x_ref, o_ref):
        # x_ref: (TR, L)  VMEM, input dtype    o_ref: (TR, L_out) VMEM, input dtype
        tr = x_ref.shape[0]

        # Interior span: K shifted, in-bounds slices of x (no scratch, no padded
        # copy), accumulated in f32, one store.
        if has_interior:
            acc = x_ref[:, 0:W].astype(jnp.float32) * taps[0]
            for k in range(1, K):
                acc = acc + x_ref[:, k:k + W].astype(jnp.float32) * taps[k]
            o_ref[:, int_lo:int_hi] = acc.astype(o_ref.dtype)

        # Boundary columns (at most ~pad0 + pad1 of them): taps that fall in the
        # zero halo are skipped entirely instead of multiplying by zero.
        for n in list(range(0, int_lo)) + list(range(int_hi, L_out)):
            o_ref[:, n:n + 1] = _boundary_col(x_ref, n, tr).astype(o_ref.dtype)

    return kernel


def _vmem_budget():
    """(row-tile byte budget, vmem_limit_bytes) for this TPU generation."""
    phys = 64 * 1024 * 1024                    # v7x-safe fallback (64 MiB / TC)
    try:
        info = pltpu.get_tpu_info()
        cap = int(getattr(info, "vmem_capacity_bytes", 0))
        if cap > 0:
            phys = cap
    except Exception:                          # interpret mode / exotic backend
        pass
    tile_budget = (2 * phys) // 5              # ~51 MiB on v5e/v6e, ~25 MiB on v7x
    vmem_limit = (3 * phys) // 4               # ~96 MiB on v5e/v6e, ~48 MiB on v7x
    return tile_budget, vmem_limit


def _pick_row_tile(R, per_row_bytes, budget_bytes, sublane=8):
    """Largest row tile that fits the VMEM budget, preferring:
       - a multiple of the sublane granule (unless the tile covers all rows),
       - >= 2 grid steps when R is large enough, so the "parallel" row axis
         shards across v7x's two TensorCores (no-op on v5e/v6e),
       - a tile that divides R (no ragged, partially-masked last block), as
         long as that costs at most ~2x in tile size.
    """
    cap = max(sublane, int(budget_bytes // max(per_row_bytes, 1)))
    cap = min(cap, 2048)
    if R >= 2 * sublane:                       # enough rows to split across TCs
        cap = min(cap, max(sublane, R // 2))
    if cap >= R:
        return R
    cap = max(sublane, (cap // sublane) * sublane)
    tr = cap
    while tr >= sublane and tr * 2 >= cap:
        if R % tr == 0:
            return tr
        tr -= sublane
    return cap


class Blur1D:
    """JAX/Pallas port of cdslib Blur1D (up = down = 1)."""

    def __init__(self, kernel, pad, kernel_scale: float = 1.0, row_block=None):
        k = np.asarray(kernel, dtype=np.float32)
        k = k / k.sum()
        k = k * np.float32(kernel_scale)
        self._taps = tuple(float(v) for v in k)            # normalized + scaled
        self._taps_flipped = tuple(reversed(self._taps))   # conv = flipped FIR
        self.kernel = jnp.asarray(k)                        # buffer, for parity
        self.pad = (int(pad[0]), int(pad[1]))
        self._row_block = row_block                         # override for tests

    def compute_output_seq_len(self, seq_len_in: int, pad_type=None):
        assert pad_type is None or pad_type == "valid"
        pad = self.pad if pad_type is None else (0, 0)
        return (seq_len_in + pad[0] + pad[1] - len(self._taps)) // 1 + 1

    def __call__(self, x):
        # x: (batch, cin, seq_len)
        B, C, L = x.shape
        K = len(self._taps)
        pad0, pad1 = self.pad
        L_out = L + pad0 + pad1 - K + 1
        assert L_out > 0, "non-positive output length"

        R = B * C
        x2d = x.reshape(R, L)

        # Negative pads crop the input (upfirdn semantics); positive pads are
        # the zero halo, handled inside the kernel via boundary columns.
        crop0, crop1 = max(0, -pad0), max(0, -pad1)
        p0, p1 = max(0, pad0), max(0, pad1)
        if crop0 or crop1:
            x2d = x2d[:, crop0:L - crop1]
        L_eff = L - crop0 - crop1
        L_pad = L_eff + p0 + p1
        assert L_pad >= K, "kernel longer than padded sequence"

        itemsize = jnp.dtype(x.dtype).itemsize
        sublane = max(8, 32 // itemsize)        # 8 for f32, 16 for bf16, 32 for int8
        # Per-row VMEM: double-buffered in/out blocks + f32 accumulator + slack
        # for slice/upcast temporaries (no scratch buffer anymore).
        per_row = 2 * L_eff * itemsize + 2 * L_out * itemsize + 4 * L_out * 4
        tile_budget, vmem_limit = _vmem_budget()
        TR = self._row_block or _pick_row_tile(R, per_row, tile_budget, sublane)
        TR = min(int(TR), R)
        grid = (pl.cdiv(R, TR),)

        kernel_fn = _make_blur1d_kernel(L_eff, L_out, K, p0, p1, self._taps_flipped)

        out2d = pl.pallas_call(
            kernel_fn,
            out_shape=jax.ShapeDtypeStruct((R, L_out), x.dtype),
            grid=grid,
            in_specs=[pl.BlockSpec((TR, L_eff), lambda i: (i, 0))],
            out_specs=pl.BlockSpec((TR, L_out), lambda i: (i, 0)),
            compiler_params=pltpu.CompilerParams(
                # Row tiles are fully independent (no carried scratch), so the
                # axis is safe to shard across v7x's two TensorCores.
                dimension_semantics=("parallel",),
                vmem_limit_bytes=int(vmem_limit),
            ),
            cost_estimate=pl.CostEstimate(
                flops=2 * R * L_out * K,
                transcendentals=0,
                bytes_accessed=R * L_eff * itemsize + R * L_out * itemsize,
            ),
        )(x2d)

        return out2d.reshape(B, C, L_out)


def _reference(x, kernel, pad, kernel_scale=1.0):
    """Pure-JAX reference: normalize+scale taps, pad, true per-row convolution."""
    k = jnp.asarray(kernel, jnp.float32)
    k = (k / jnp.sum(k)) * kernel_scale
    B, C, L = x.shape
    K = k.shape[0]
    pad0, pad1 = pad
    L_out = L + pad0 + pad1 - K + 1
    x_pad = jnp.pad(x.astype(jnp.float32),
                    ((0, 0), (0, 0), (max(pad0, 0), max(pad1, 0))))
    if pad0 < 0:
        x_pad = x_pad[:, :, -pad0:]
    if pad1 < 0:
        x_pad = x_pad[:, :, :pad1]
    w = k[::-1]
    out = jnp.zeros((B, C, L_out), jnp.float32)
    for i in range(K):
        out = out + x_pad[:, :, i:i + L_out] * w[i]
    return out.astype(x.dtype)


if __name__ == "__main__":
    key0, key1, key2 = jax.random.split(jax.random.PRNGKey(0), 3)

    # Test 1: canonical blur kernel, same-length output, single row block.
    fir = [1.0, 3.0, 3.0, 1.0]
    pad = (2, 1)
    blur = Blur1D(fir, pad, kernel_scale=1.0)
    x = jax.random.normal(key0, (2, 4, 16), dtype=jnp.float32)   # (batch, cin, seq)
    out = jax.block_until_ready(blur(x))
    ref = _reference(x, fir, pad, kernel_scale=1.0)
    assert out.shape == (2, 4, blur.compute_output_seq_len(16)), out.shape
    assert jnp.allclose(out, ref, atol=1e-5, rtol=1e-5), "mismatch vs reference (test 1)"

    # Test 2: kernel_scale != 1, shrinking output, forced 2-step row grid
    # (R = 16, row_block = 8) to exercise the tiled / pipelined / megacore path.
    fir2 = [1.0, 2.0, 1.0]
    pad2 = (1, 0)
    blur2 = Blur1D(fir2, pad2, kernel_scale=2.0, row_block=8)
    x2 = jax.random.normal(key1, (2, 8, 32), dtype=jnp.float32)
    out2 = jax.block_until_ready(blur2(x2))
    ref2 = _reference(x2, fir2, pad2, kernel_scale=2.0)
    assert out2.shape == (2, 8, blur2.compute_output_seq_len(32)), out2.shape
    assert jnp.allclose(out2, ref2, atol=1e-5, rtol=1e-5), "mismatch vs reference (test 2)"

    # Test 3: bf16 input + ragged last row block (R = 24, TR = 16 -> grid of 2,
    # last block partially masked), symmetric 5-tap kernel.
    fir3 = [1.0, 2.0, 3.0, 2.0, 1.0]
    pad3 = (2, 2)
    blur3 = Blur1D(fir3, pad3, kernel_scale=1.0, row_block=16)
    x3 = jax.random.normal(key2, (3, 8, 32), dtype=jnp.bfloat16)
    out3 = jax.block_until_ready(blur3(x3))
    ref3 = _reference(x3, fir3, pad3, kernel_scale=1.0)
    assert out3.shape == (3, 8, blur3.compute_output_seq_len(32)), out3.shape
    assert jnp.allclose(out3.astype(jnp.float32), ref3.astype(jnp.float32),
                        atol=2e-2, rtol=2e-2), "mismatch vs reference (test 3)"

    print("KERNEL_OK")
</pallas_src>

<mosaic_0001>
module attributes {stable_mosaic.version = 11 : i64} {
  func.func @kernel(%arg0: i32, %arg1: memref<8x16xf32, #tpu.memory_space<vmem>>, %arg2: memref<8x16xf32, #tpu.memory_space<vmem>>) attributes {dimension_semantics = [#tpu.dimension_semantics<parallel>], iteration_bounds = array<i64: 1>, scalar_prefetch = 0 : i64, scratch_operands = 0 : i64, tpu.core_type = #tpu.core_type<tc>, window_params = [{transform_indices = @transform_0, window_bounds = array<i64: 8, 16>}, {transform_indices = @transform_1, window_bounds = array<i64: 8, 16>}]} {
    %c0 = arith.constant 0 : index
    %c0_0 = arith.constant 0 : index
    %0 = vector.load %arg1[%c0, %c0_0] : memref<8x16xf32, #tpu.memory_space<vmem>>, vector<8x13xf32>
    %cst = arith.constant 1.250000e-01 : f32
    %1 = vector.broadcast %cst : f32 to vector<8x13xf32>
    %2 = arith.mulf %0, %1 : vector<8x13xf32>
    %c0_1 = arith.constant 0 : index
    %c1 = arith.constant 1 : index
    %3 = vector.load %arg1[%c0_1, %c1] : memref<8x16xf32, #tpu.memory_space<vmem>>, vector<8x13xf32>
    %cst_2 = arith.constant 3.750000e-01 : f32
    %4 = vector.broadcast %cst_2 : f32 to vector<8x13xf32>
    %5 = arith.mulf %3, %4 : vector<8x13xf32>
    %6 = arith.addf %2, %5 : vector<8x13xf32>
    %c0_3 = arith.constant 0 : index
    %c2 = arith.constant 2 : index
    %7 = vector.load %arg1[%c0_3, %c2] : memref<8x16xf32, #tpu.memory_space<vmem>>, vector<8x13xf32>
    %cst_4 = arith.constant 3.750000e-01 : f32
    %8 = vector.broadcast %cst_4 : f32 to vector<8x13xf32>
    %9 = arith.mulf %7, %8 : vector<8x13xf32>
    %10 = arith.addf %6, %9 : vector<8x13xf32>
    %c0_5 = arith.constant 0 : index
    %c3 = arith.constant 3 : index
    %11 = vector.load %arg1[%c0_5, %c3] : memref<8x16xf32, #tpu.memory_space<vmem>>, vector<8x13xf32>
    %cst_6 = arith.constant 1.250000e-01 : f32
    %12 = vector.broadcast %cst_6 : f32 to vector<8x13xf32>
    %13 = arith.mulf %11, %12 : vector<8x13xf32>
    %14 = arith.addf %10, %13 : vector<8x13xf32>
    %c0_7 = arith.constant 0 : index
    %c2_8 = arith.constant 2 : index
    %15 = vector.load %arg2[%c0_7, %c2_8] : memref<8x16xf32, #tpu.memory_space<vmem>>, vector<8x13xf32>
    tpu.vector_store %arg2[%c0_7, %c2_8], %14 {strides = array<i32>} : memref<8x16xf32, #tpu.memory_space<vmem>>, vector<8x13xf32>,
    %c0_9 = arith.constant 0 : index
    %c0_10 = arith.constant 0 : index
    %16 = vector.load %arg1[%c0_9, %c0_10] : memref<8x16xf32, #tpu.memory_space<vmem>>, vector<8x1xf32>
    %cst_11 = arith.constant 3.750000e-01 : f32
    %17 = vector.broadcast %cst_11 : f32 to vector<8x1xf32>
    %18 = arith.mulf %16, %17 : vector<8x1xf32>
    %c0_12 = arith.constant 0 : index
    %c1_13 = arith.constant 1 : index
    %19 = vector.load %arg1[%c0_12, %c1_13] : memref<8x16xf32, #tpu.memory_space<vmem>>, vector<8x1xf32>
    %cst_14 = arith.constant 1.250000e-01 : f32
    %20 = vector.broadcast %cst_14 : f32 to vector<8x1xf32>
    %21 = arith.mulf %19, %20 : vector<8x1xf32>
    %22 = arith.addf %18, %21 : vector<8x1xf32>
    %c0_15 = arith.constant 0 : index
    %c0_16 = arith.constant 0 : index
    %23 = vector.load %arg2[%c0_15, %c0_16] : memref<8x16xf32, #tpu.memory_space<vmem>>, vector<8x1xf32>
    tpu.vector_store %arg2[%c0_15, %c0_16], %22 {strides = array<i32>} : memref<8x16xf32, #tpu.memory_space<vmem>>, vector<8x1xf32>,
    %c0_17 = arith.constant 0 : index
    %c0_18 = arith.constant 0 : index
    %24 = vector.load %arg1[%c0_17, %c0_18] : memref<8x16xf32, #tpu.memory_space<vmem>>, vector<8x1xf32>
    %cst_19 = arith.constant 3.750000e-01 : f32
    %25 = vector.broadcast %cst_19 : f32 to vector<8x1xf32>
    %26 = arith.mulf %24, %25 : vector<8x1xf32>
    %c0_20 = arith.constant 0 : index
    %c1_21 = arith.constant 1 : index
    %27 = vector.load %arg1[%c0_20, %c1_21] : memref<8x16xf32, #tpu.memory_space<vmem>>, vector<8x1xf32>
    %cst_22 = arith.constant 3.750000e-01 : f32
    %28 = vector.broadcast %cst_22 : f32 to vector<8x1xf32>
    %29 = arith.mulf %27, %28 : vector<8x1xf32>
    %30 = arith.addf %26, %29 : vector<8x1xf32>
    %c0_23 = arith.constant 0 : index
    %c2_24 = arith.constant 2 : index
    %31 = vector.load %arg1[%c0_23, %c2_24] : memref<8x16xf32, #tpu.memory_space<vmem>>, vector<8x1xf32>
    %cst_25 = arith.constant 1.250000e-01 : f32
    %32 = vector.broadcast %cst_25 : f32 to vector<8x1xf32>
    %33 = arith.mulf %31, %32 : vector<8x1xf32>
    %34 = arith.addf %30, %33 : vector<8x1xf32>
    %c0_26 = arith.constant 0 : index
    %c1_27 = arith.constant 1 : index
    %35 = vector.load %arg2[%c0_26, %c1_27] : memref<8x16xf32, #tpu.memory_space<vmem>>, vector<8x1xf32>
    tpu.vector_store %arg2[%c0_26, %c1_27], %34 {strides = array<i32>} : memref<8x16xf32, #tpu.memory_space<vmem>>, vector<8x1xf32>,
    %c0_28 = arith.constant 0 : index
    %c13 = arith.constant 13 : index
    %36 = vector.load %arg1[%c0_28, %c13] : memref<8x16xf32, #tpu.memory_space<vmem>>, vector<8x1xf32>
    %cst_29 = arith.constant 1.250000e-01 : f32
    %37 = vector.broadcast %cst_29 : f32 to vector<8x1xf32>
    %38 = arith.mulf %36, %37 : vector<8x1xf32>
    %c0_30 = arith.constant 0 : index
    %c14 = arith.constant 14 : index
    %39 = vector.load %arg1[%c0_30, %c14] : memref<8x16xf32, #tpu.memory_space<vmem>>, vector<8x1xf32>
    %cst_31 = arith.constant 3.750000e-01 : f32
    %40 = vector.broadcast %cst_31 : f32 to vector<8x1xf32>
    %41 = arith.mulf %39, %40 : vector<8x1xf32>
    %42 = arith.addf %38, %41 : vector<8x1xf32>
    %c0_32 = arith.constant 0 : index
    %c15 = arith.constant 15 : index
    %43 = vector.load %arg1[%c0_32, %c15] : memref<8x16xf32, #tpu.memory_space<vmem>>, vector<8x1xf32>
    %cst_33 = arith.constant 3.750000e-01 : f32
    %44 = vector.broadcast %cst_33 : f32 to vector<8x1xf32>
    %45 = arith.mulf %43, %44 : vector<8x1xf32>
    %46 = arith.addf %42, %45 : vector<8x1xf32>
    %c0_34 = arith.constant 0 : index
    %c15_35 = arith.constant 15 : index
    %47 = vector.load %arg2[%c0_34, %c15_35] : memref<8x16xf32, #tpu.memory_space<vmem>>, vector<8x1xf32>
    tpu.vector_store %arg2[%c0_34, %c15_35], %46 {strides = array<i32>} : memref<8x16xf32, #tpu.memory_space<vmem>>, vector<8x1xf32>,
    return
  }
  func.func @transform_0(%arg0: i32) -> (i32, i32) {
    %c0_i32 = arith.constant 0 : i32
    %c0_i32_0 = arith.constant 0 : i32
    return %arg0, %c0_i32 : i32, i32
  }
  func.func @transform_1(%arg0: i32) -> (i32, i32) {
    %c0_i32 = arith.constant 0 : i32
    %c0_i32_0 = arith.constant 0 : i32
    return %arg0, %c0_i32 : i32, i32
  }
}

</mosaic_0001>

<llo_original>
// kernel: tpu_custom_call.1
$region0: #{tpu_custom_call.1}
  #allocation0 [shape = 'u32[]', space=smem, size = 0x4, offset = 0x4, fixed_abs, tag = 'smem constant byte address 0x4 - core index']
  #allocation1 [shape = 'u32[144,128]{1,0:T(1,128)}', space=vmem, size = 0x12000, scoped, tag = 'internal scratch']
  %s0 = inlined_call_operand.hbm [shape: f32[8,16], index: 0, kind: input, shape index: {}]
  %s1 = inlined_call_operand.hbm [shape: f32[8,16], index: 1, kind: output, shape index: {}]
  %s2 = sld [smem:[#allocation0]]
  $region18: #{tpu_custom_call.1} parent=0
    _
  %s4 = ssub.s32 1, %s2
  %s5 = scalar_select 0, %s4, %s2
  $region1: #{tpu_custom_call.1} parent=0
    #allocation2 [shape = 'u8[4096]{0}', space=vmem, size = 0x1000, scoped, tag = 'input window, operand 0, single buffered']
    #allocation3 [shape = 's32[1]{0}', space=sflag, size = 0x4, scoped, tag = 'scoped memory for tpu_custom_call.1']
    #allocation4 [shape = 's32[1]{0}', space=sflag, size = 0x4, scoped, tag = 'scoped memory for tpu_custom_call.1']
    #allocation5 [shape = 'u8[4096]{0}', space=vmem, size = 0x1000, scoped, tag = 'output window, operand 0, single buffered']
    %6 = vsyncpa [#allocation3], 0
    %7 = vsyncpa [#allocation4], 0
    // Predicated region
    $region2: #{tpu_custom_call.1} parent=1 // pred_check
      _
    $region3: #{tpu_custom_call.1} parent=1 // pred_check_branch
      %9 = sbr.rel (0) target = $region5
    $region4: #{tpu_custom_call.1} parent=1 // pred_region
      %s11 = ssub.s32 128, 128
      %12 = vsyncadd [#allocation3], %s11
      %s14 = sshll.u32 [#allocation2], 4
      %s15 = int_to_ptr.vmem [resolvable:$true] %s14
      %17 = dma.hbm_to_vmem [thread:$0]  %s0, 128, %s15, [#allocation3]
    $region5: #{tpu_custom_call.1} parent=1 // pred_fallthru
      _
    // Predicated region
    $region6: #{tpu_custom_call.1} parent=1 // pred_check
      _
    $region7: #{tpu_custom_call.1} parent=1 // pred_check_branch
      %19 = sbr.rel (0) target = $region9
    $region8: #{tpu_custom_call.1} parent=1 // pred_region
      %20 = dma.done [#allocation3], 128
    $region9: #{tpu_custom_call.1} parent=1 // pred_fallthru
      _
    %v21 = vld [vmem:[#allocation2] sm:$0xff]
    %v22 = vmul.f32 %v21, 0.125
    %v23 = vmul.f32 %v21, 0.375
    %25 = vrot.lane.b32.xlu0 %v23, 127
    %v26 = vpop.permute.xlu0 %25
    %v28 = vadd.f32 %v22, %v26
    %29 = vrot.lane.b32.xlu0 %v23, 126
    %v30 = vpop.permute.xlu0 %29
    %v32 = vadd.f32 %v28, %v30
    %34 = vrot.lane.b32.xlu0 %v22, 125
    %v35 = vpop.permute.xlu0 %34
    %v37 = vadd.f32 %v32, %v35
    %39 = vrot.lane.b32.xlu0 %v37, 2
    %v40 = vpop.permute.xlu0 %39
    %vm42 = vcmask 121872
    %43 = vst.msk [vmem:[#allocation5] sm:$0xff] %vm42, %v40
    %v44 = vld [vmem:[#allocation2] sm:$0xff]
    %v45 = vmul.f32 %v44, 0.375
    %v46 = vmul.f32 %v44, 0.125
    %48 = vrot.lane.b32.xlu0 %v46, 127
    %v49 = vpop.permute.xlu0 %48
    %v51 = vadd.f32 %v45, %v49
    %vm52 = vcmask 7168
    %53 = vst.msk [vmem:[#allocation5] sm:$0xff] %vm52, %v51
    %v54 = vld [vmem:[#allocation2] sm:$0xff]
    %v55 = vmul.f32 %v54, 0.375
    %57 = vrot.lane.b32.xlu0 %v55, 127
    %v58 = vpop.permute.xlu0 %57
    %v60 = vadd.f32 %v55, %v58
    %v61 = vmul.f32 %v54, 0.125
    %63 = vrot.lane.b32.xlu0 %v61, 126
    %v64 = vpop.permute.xlu0 %63
    %v66 = vadd.f32 %v60, %v64
    %68 = vrot.lane.b32.xlu0 %v66, 1
    %v69 = vpop.permute.xlu0 %68
    %vm71 = vcmask 15368
    %72 = vst.msk [vmem:[#allocation5] sm:$0xff] %vm71, %v69
    %v73 = vld [vmem:[#allocation2] sm:$0xff]
    %v74 = vmul.f32 %v73, 0.125
    %v75 = vmul.f32 %v73, 0.375
    %77 = vrot.lane.b32.xlu0 %v75, 127
    %v78 = vpop.permute.xlu0 %77
    %v80 = vadd.f32 %v74, %v78
    %81 = vrot.lane.b32.xlu0 %v75, 126
    %v82 = vpop.permute.xlu0 %81
    %v84 = vadd.f32 %v80, %v82
    %86 = vrot.lane.b32.xlu0 %v84, 2
    %v87 = vpop.permute.xlu0 %86
    %vm89 = vcmask 130168
    %90 = vst.msk [vmem:[#allocation5] sm:$0xff] %vm89, %v87
    // Predicated region
    $region10: #{tpu_custom_call.1} parent=1 // pred_check
      _
    $region11: #{tpu_custom_call.1} parent=1 // pred_check_branch
      %92 = sbr.rel (0) target = $region13
    $region12: #{tpu_custom_call.1} parent=1 // pred_region
      %s94 = ssub.s32 128, 128
      %95 = vsyncadd [#allocation4], %s94
      %s97 = sshll.u32 [#allocation5], 4
      %s98 = int_to_ptr.vmem [resolvable:$true] %s97
      %100 = dma.vmem_to_hbm [thread:$0]  %s98, 128, %s1, [#allocation4]
    $region13: #{tpu_custom_call.1} parent=1 // pred_fallthru
      _
    // Predicated region
    $region14: #{tpu_custom_call.1} parent=1 // pred_check
      _
    $region15: #{tpu_custom_call.1} parent=1 // pred_check_branch
      %102 = sbr.rel (0) target = $region17
    $region16: #{tpu_custom_call.1} parent=1 // pred_region
      %103 = dma.done [#allocation4], 128
    $region17: #{tpu_custom_call.1} parent=1 // pred_fallthru
      _
    %104 = vsyncpa [#allocation3], 1
    %105 = vsyncpa [#allocation4], 1

</llo_original>
